<compile_context>
chip_gen: v5e
topology: v5e:2x2
jax: 0.10.0
libtpu: 0.0.40
codegen_flags: <defaults>
</compile_context>

<pallas_src>
import functools

import jax
import jax.numpy as jnp
from jax.experimental import pallas as pl
from jax.experimental.pallas import tpu as pltpu


def _normalize_kernel(x_ref, o_ref, *, eps, inv_n, inv_nm1):
    # x_ref / o_ref: (tb, N) -- tb whole flattened planes resident in VMEM.
    x = x_ref[...].astype(jnp.float32)

    # Single-pass per-plane statistics (one traversal of the block).
    s1 = jnp.sum(x, axis=1, keepdims=True)          # (tb, 1)
    s2 = jnp.sum(x * x, axis=1, keepdims=True)      # (tb, 1)
    mean = s1 * inv_n
    # Unbiased variance; clamp >= 0 against f32 cancellation on flat planes.
    var = jnp.maximum((s2 - s1 * mean) * inv_nm1, 0.0)
    std = jnp.sqrt(var)

    # Per-plane scale instead of a full-block divide (divide only on (tb, 1)).
    scale = pl.reciprocal(std + eps)
    o_ref[...] = ((x - mean) * scale).astype(o_ref.dtype)


def _choose_block_planes(n_planes, plane_bytes, target_bytes=3 << 20):
    """Pick how many whole planes to process per grid step.

    Aim for ~3 MiB of input per block (85%+ of HBM roofline in the measured
    tiling sweep, amortizes the ~0.35 us per-step overhead) while keeping the
    sublane (second-minor) block dim either 8-aligned or the full batch dim,
    and preferring >= 2 grid steps so v7x's two TensorCores both get work.
    """
    tb = max(1, min(n_planes, target_bytes // max(plane_bytes, 1)))
    if tb >= n_planes:
        # Whole batch fits in one block: split into two aligned halves if we
        # can, so the "parallel" grid axis has >= 2 steps.
        if n_planes % 16 == 0:
            return n_planes // 2
        return n_planes
    if tb >= 8:
        tb -= tb % 8  # keep the sublane block dim 8-aligned
    return int(tb)


def normalize(x, eps=1e-10):
    """Pallas equivalent of Normalize(eps).forward(x) for x of shape (B, H, W)."""
    B, H, W = x.shape
    n = H * W
    assert n > 1, "need at least 2 elements per plane for the unbiased std"

    # Free, contiguous reshape: guarantees lane-dense blocks along N = H*W.
    x2 = x.reshape(B, n)

    itemsize = jnp.dtype(x.dtype).itemsize
    plane_in_bytes = n * itemsize
    plane_f32_bytes = n * 4

    tb = _choose_block_planes(B, plane_in_bytes)
    # Ragged last block is fine: planes are independent and Pallas masks the
    # out-of-bounds part of the final store.
    grid = pl.cdiv(B, tb)

    # VMEM budget: double-buffered in + out blocks plus ~3x f32 temporaries.
    # TODO(synk): planes too large for a (1, H*W) block under this budget need
    # an H-tiled two-pass (partial-reduction) variant with a grid over H.
    vmem_est = 4 * tb * plane_in_bytes + 3 * tb * plane_f32_bytes + (1 << 20)
    vmem_limit = int(min(64 << 20, max(vmem_est, 4 << 20)))

    kernel = functools.partial(
        _normalize_kernel,
        eps=float(eps),
        inv_n=1.0 / float(n),
        inv_nm1=1.0 / float(n - 1),
    )

    out = pl.pallas_call(
        kernel,
        out_shape=jax.ShapeDtypeStruct((B, n), x.dtype),
        grid_spec=pltpu.PrefetchScalarGridSpec(
            num_scalar_prefetch=0,
            grid=(grid,),
            in_specs=[pl.BlockSpec((tb, n), lambda b: (b, 0))],
            out_specs=pl.BlockSpec((tb, n), lambda b: (b, 0)),
        ),
        compiler_params=pltpu.CompilerParams(
            dimension_semantics=("parallel",),
            vmem_limit_bytes=vmem_limit,
        ),
        cost_estimate=pl.CostEstimate(
            flops=6 * B * n,
            transcendentals=2 * B,
            bytes_accessed=2 * B * n * itemsize,
        ),
    )(x2)
    return out.reshape(B, H, W)


def _normalize_ref(x, eps=1e-10):
    # Pure-JAX reference replicating the intended torch semantics
    # (mean + unbiased std over dims (1, 2), broadcast per plane).
    xf = x.astype(jnp.float32)
    n = x.shape[1] * x.shape[2]
    mean = jnp.mean(xf, axis=(1, 2), keepdims=True)
    var = jnp.sum((xf - mean) ** 2, axis=(1, 2), keepdims=True) / (n - 1)
    std = jnp.sqrt(var)
    return ((xf - mean) / (std + eps)).astype(x.dtype)


def _check(x, rtol, atol):
    out = jax.block_until_ready(normalize(x))
    ref = _normalize_ref(x)
    assert out.shape == ref.shape == x.shape, out.shape
    err = float(jnp.max(jnp.abs(out.astype(jnp.float32) - ref.astype(jnp.float32))))
    assert jnp.allclose(out.astype(jnp.float32), ref.astype(jnp.float32),
                        rtol=rtol, atol=atol), err


if __name__ == "__main__":
    key = jax.random.PRNGKey(0)
    k1, k2, k3 = jax.random.split(key, 3)

    # (B, H, W) with H*W a multiple of 128 -> lane-dense stores; B=32 splits
    # into two 16-plane blocks (grid of 2 "parallel" steps).
    x1 = jax.random.normal(k1, (32, 16, 128), dtype=jnp.float32) * 3.0 + 1.5
    _check(x1, rtol=1e-4, atol=1e-5)

    # Odd / non-128-multiple shapes (full-extent lane dim, single block).
    x2 = jax.random.normal(k2, (3, 8, 96), dtype=jnp.float32) * 0.5 - 2.0
    _check(x2, rtol=1e-4, atol=1e-5)

    # bf16 input: exercises dtype-aware block sizing and in-kernel f32 compute.
    x3 = (jax.random.normal(k3, (4, 16, 128), dtype=jnp.float32) * 2.0 + 0.7
          ).astype(jnp.bfloat16)
    _check(x3, rtol=3e-2, atol=3e-2)

    print("KERNEL_OK")
</pallas_src>

<mosaic_0001>
module attributes {stable_mosaic.version = 11 : i64} {
  func.func @_normalize_kernel(%arg0: i32, %arg1: memref<16x2048xf32, #tpu.memory_space<vmem>>, %arg2: memref<16x2048xf32, #tpu.memory_space<vmem>>) attributes {dimension_semantics = [#tpu.dimension_semantics<parallel>], iteration_bounds = array<i64: 2>, scalar_prefetch = 0 : i64, scratch_operands = 0 : i64, tpu.core_type = #tpu.core_type<tc>, window_params = [{transform_indices = @transform_0, window_bounds = array<i64: 16, 2048>}, {transform_indices = @transform_1, window_bounds = array<i64: 16, 2048>}]} {
    %c0 = arith.constant 0 : index
    %c0_0 = arith.constant 0 : index
    %0 = vector.load %arg1[%c0, %c0_0] : memref<16x2048xf32, #tpu.memory_space<vmem>>, vector<16x2048xf32>
    %cst = arith.constant dense<0.000000e+00> : vector<16xf32>
    %1 = vector.multi_reduction <add>, %0, %cst [1] : vector<16x2048xf32> to vector<16xf32>
    %2 = vector.shape_cast %1 : vector<16xf32> to vector<16x1xf32>
    %3 = arith.mulf %0, %0 : vector<16x2048xf32>
    %cst_1 = arith.constant dense<0.000000e+00> : vector<16xf32>
    %4 = vector.multi_reduction <add>, %3, %cst_1 [1] : vector<16x2048xf32> to vector<16xf32>
    %5 = vector.shape_cast %4 : vector<16xf32> to vector<16x1xf32>
    %cst_2 = arith.constant 4.8828125E-4 : f32
    %6 = vector.broadcast %cst_2 : f32 to vector<16x1xf32>
    %7 = arith.mulf %2, %6 : vector<16x1xf32>
    %8 = arith.mulf %2, %7 : vector<16x1xf32>
    %9 = arith.subf %5, %8 : vector<16x1xf32>
    %cst_3 = arith.constant 4.88519785E-4 : f32
    %10 = vector.broadcast %cst_3 : f32 to vector<16x1xf32>
    %11 = arith.mulf %9, %10 : vector<16x1xf32>
    %cst_4 = arith.constant 0.000000e+00 : f32
    %12 = vector.broadcast %cst_4 : f32 to vector<16x1xf32>
    %13 = arith.maximumf %11, %12 : vector<16x1xf32>
    %14 = math.sqrt %13 : vector<16x1xf32>
    %cst_5 = arith.constant 1.000000e-10 : f32
    %15 = vector.broadcast %cst_5 : f32 to vector<16x1xf32>
    %16 = arith.addf %14, %15 : vector<16x1xf32>
    %17 = tpu.reciprocal %16 : vector<16x1xf32> -> vector<16x1xf32>
    %18 = vector.broadcast %7 : vector<16x1xf32> to vector<16x2048xf32>
    %19 = arith.subf %0, %18 : vector<16x2048xf32>
    %20 = vector.broadcast %17 : vector<16x1xf32> to vector<16x2048xf32>
    %21 = arith.mulf %19, %20 : vector<16x2048xf32>
    %c0_6 = arith.constant 0 : index
    %c0_7 = arith.constant 0 : index
    %22 = vector.load %arg2[%c0_6, %c0_7] : memref<16x2048xf32, #tpu.memory_space<vmem>>, vector<16x2048xf32>
    tpu.vector_store %arg2[%c0_6, %c0_7], %21 {strides = array<i32>} : memref<16x2048xf32, #tpu.memory_space<vmem>>, vector<16x2048xf32>,
    return
  }
  func.func @transform_0(%arg0: i32) -> (i32, i32) {
    %c0_i32 = arith.constant 0 : i32
    %c0_i32_0 = arith.constant 0 : i32
    return %arg0, %c0_i32 : i32, i32
  }
  func.func @transform_1(%arg0: i32) -> (i32, i32) {
    %c0_i32 = arith.constant 0 : i32
    %c0_i32_0 = arith.constant 0 : i32
    return %arg0, %c0_i32 : i32, i32
  }
}

</mosaic_0001>

<llo_original>
// kernel: tpu_custom_call.1
$region0: #{tpu_custom_call.1}
  #allocation0 [shape = 'u32[]', space=smem, size = 0x4, offset = 0x4, fixed_abs, tag = 'smem constant byte address 0x4 - core index']
  #allocation1 [shape = 'u32[72,128]{1,0:T(1,128)}', space=vmem, size = 0x9000, scoped, tag = 'internal scratch']
  %s0 = inlined_call_operand.hbm [shape: f32[32,2048], index: 0, kind: input, shape index: {}]
  %s1 = inlined_call_operand.hbm [shape: f32[32,2048], index: 1, kind: output, shape index: {}]
  %s2 = sld [smem:[#allocation0]]
  $region41: #{tpu_custom_call.1} parent=0
    _
  %s4 = ssub.s32 1, %s2
  %s5 = scalar_select 0, %s4, %s2
  $region1: #{tpu_custom_call.1} parent=0
    #allocation2 [shape = 'u8[262144]{0}', space=vmem, size = 0x40000, scoped, tag = 'input window, operand 0']
    #allocation3 [shape = 's32[2]{0}', space=sflag, size = 0x8, scoped, tag = 'scoped memory for tpu_custom_call.1']
    #allocation4 [shape = 's32[2]{0}', space=sflag, size = 0x8, scoped, tag = 'scoped memory for tpu_custom_call.1']
    #allocation5 [shape = 'u8[262144]{0}', space=vmem, size = 0x40000, scoped, tag = 'output window, operand 0']
    %6 = vsyncpa [#allocation3], 0
    %s7 = scalar_lea.sflag [#allocation3], 1
    %8 = vsyncpa %s7, 0
    %9 = vsyncpa [#allocation4], 0
    %s10 = scalar_lea.sflag [#allocation4], 1
    %11 = vsyncpa %s10, 0
    loop: start=0, step=1, limit=4
    $region2: #{tpu_custom_call.1} parent=1 // loop_pre_header
      _
    $region3: #{tpu_custom_call.1} parent=1 // loop_header
      %s13 = sphi 0, %s17
      %p14 = scmp.ge.s32.totalorder %s13, 4
      %s23 = sphi 0, %s25
      %s26 = sphi 0, %s23
      %s27 = sphi 0, %s26
      %s43 = sphi 0, %s27
      %s49 = sphi 0, %s51
      %s52 = sphi 0, %s49
      %s53 = sphi 0, %s52
      %s69 = sphi 0, %s53
    $region4: #{tpu_custom_call.1} parent=1 // loop_header_branch
      %16 = sbr.rel (%p14) target = $region8
    $region5: #{tpu_custom_call.1} parent=1 // loop_body
      %s18 = ssub.s32 %s13, 1
      %s19 = ssub.s32 %s13, 2
      %s20 = sadd.s32 %s13, 1
      %s21 = ssub.s32 %s13, %s20
      %p22 = scmp.eq.s32.totalorder %s21, 0
      %s24 = sadd.s32 %s23, 1
      %s25 = scalar_select %p22, %s23, %s24
      %p28 = pneg %p22
      %p29 = scmp.eq.s32.totalorder %s13, 1
      %p30 = por %p28, %p29
      %p31 = scmp.ne.s32.totalorder %s23, %s26
      %p32 = scmp.eq.s32.totalorder %s13, 0
      %p33 = por %p31, %p32
      %p34 = scmp.ne.s32.totalorder %s23, %s26
      %p35 = scmp.eq.s32.totalorder %s18, 1
      %p36 = por %p34, %p35
      %p37 = scmp.ne.s32.totalorder %s26, %s27
      %p38 = scmp.eq.s32.totalorder %s18, 0
      %p39 = por %p37, %p38
      %p40 = scmp.ne.s32.totalorder %s26, %s27
      %p41 = scmp.eq.s32.totalorder %s19, 1
      %p42 = por %p40, %p41
      %p44 = scmp.ne.s32.totalorder %s27, %s43
      %p45 = scmp.eq.s32.totalorder %s19, 0
      %p46 = por %p44, %p45
      %s47 = ssub.s32 %s13, %s20
      %p48 = scmp.eq.s32.totalorder %s47, 0
      %s50 = sadd.s32 %s49, 1
      %s51 = scalar_select %p48, %s49, %s50
      %p54 = pneg %p48
      %p55 = scmp.eq.s32.totalorder %s13, 1
      %p56 = por %p54, %p55
      %p57 = scmp.ne.s32.totalorder %s49, %s52
      %p58 = scmp.eq.s32.totalorder %s13, 0
      %p59 = por %p57, %p58
      %p60 = scmp.ne.s32.totalorder %s49, %s52
      %p61 = scmp.eq.s32.totalorder %s18, 1
      %p62 = por %p60, %p61
      %p63 = scmp.ne.s32.totalorder %s52, %s53
      %p64 = scmp.eq.s32.totalorder %s18, 0
      %p65 = por %p63, %p64
      %p66 = scmp.ne.s32.totalorder %s52, %s53
      %p67 = scmp.eq.s32.totalorder %s19, 1
      %p68 = por %p66, %p67
      %p70 = scmp.ne.s32.totalorder %s53, %s69
      %p71 = scmp.eq.s32.totalorder %s19, 0
      %p72 = por %p70, %p71
      %p73 = scmp.le.s32.totalorder 1, %s13
      %p74 = scmp.lt.s32.totalorder %s13, 3
      %p75 = pnand %p73, %p74
      %p76 = pneg %p75
      // Predicated region
      $region9: #{tpu_custom_call.1} parent=5 // pred_check
        _
      $region10: #{tpu_custom_call.1} parent=5 // pred_check_branch
        %78 = sbr.rel (%p75) target = $region12
      $region11: #{tpu_custom_call.1} parent=5 // pred_region
        %s79 = ssub.s32 %s13, 1
      $region12: #{tpu_custom_call.1} parent=5 // pred_fallthru
        _
      %p80 = scmp.lt.s32.totalorder %s13, 2
      // Predicated region
      $region13: #{tpu_custom_call.1} parent=5 // pred_check
        %p81 = pneg %p80
      $region14: #{tpu_custom_call.1} parent=5 // pred_check_branch
        %83 = sbr.rel (%p81) target = $region16
      $region15: #{tpu_custom_call.1} parent=5 // pred_region
        // Predicated region
        $region17: #{tpu_custom_call.1} parent=15 // pred_check
          %p84 = pneg %p33
        $region18: #{tpu_custom_call.1} parent=15 // pred_check_branch
          %86 = sbr.rel (%p84) target = $region20
        $region19: #{tpu_custom_call.1} parent=15 // pred_region
          %s87 = sand.u32 %s23, 1
          %s88 = scalar_lea.sflag [#allocation3], %s87
          %s89 = sand.u32 %s23, 1
          %s90 = smul.addr %s89, 256
          %s91 = scalar_lea.vmem [#allocation2], %s90
          %s92 = smul.u32 2, %s13
          %94 = vsyncadd %s88, 0
          %s95 = smul.addr %s92, 16
          %s96 = smul.addr %s95, 8
          %s97 = scalar_lea.hbm %s0, %s96
          %s98 = sshll.u32 %s97, 4
          %s99 = int_to_ptr.hbm [resolvable:$true] %s98
          %s100 = sshll.u32 %s91, 4
          %s101 = int_to_ptr.vmem [resolvable:$true] %s100
          %106 = dma.hbm_to_vmem [thread:$0]  %s99, 4096, %s101, %s88, 2048, 2048, 128
        $region20: #{tpu_custom_call.1} parent=15 // pred_fallthru
          _
      $region16: #{tpu_custom_call.1} parent=5 // pred_fallthru
        _
      %p107 = scmp.le.s32.totalorder 1, %s13
      %p108 = scmp.lt.s32.totalorder %s13, 3
      %p109 = pnand %p107, %p108
      %p110 = pneg %p109
      // Predicated region
      $region21: #{tpu_custom_call.1} parent=5 // pred_check
        _
      $region22: #{tpu_custom_call.1} parent=5 // pred_check_branch
        %112 = sbr.rel (%p109) target = $region24
      $region23: #{tpu_custom_call.1} parent=5 // pred_region
        %s113 = ssub.s32 %s13, 1
        %s114 = sand.u32 %s26, 1
        %s115 = scalar_lea.sflag [#allocation3], %s114
        %s116 = sand.u32 %s26, 1
        %s117 = smul.addr %s116, 256
        %s118 = scalar_lea.vmem [#allocation2], %s117
        // Predicated region
        $region25: #{tpu_custom_call.1} parent=23 // pred_check
          %p119 = pneg %p39
        $region26: #{tpu_custom_call.1} parent=23 // pred_check_branch
          %121 = sbr.rel (%p119) target = $region28
        $region27: #{tpu_custom_call.1} parent=23 // pred_region
          %123 = dma.done %s115, 4096
        $region28: #{tpu_custom_call.1} parent=23 // pred_fallthru
          _
        %s124 = sand.u32 %s26, 1
        %s125 = scalar_lea.sflag [#allocation3], %s124
        %s126 = sand.u32 %s26, 1
        %s127 = smul.addr %s126, 256
        %s128 = scalar_lea.vmem [#allocation2], %s127
        %p129 = pneg %p39
        %p130 = pneg %p36
        %p131 = pneg %p65
        %p132 = pneg %p62
        %s133 = sand.u32 %s52, 1
        %s134 = scalar_lea.sflag [#allocation4], %s133
        %s135 = sand.u32 %s52, 1
        %s136 = smul.addr %s135, 256
        %s137 = scalar_lea.vmem [#allocation5], %s136
        %s138 = smul.u32 2, %s18
        %s139 = smul.u32 2, %s18
        %v140 = vld [vmem:[%s118] sm:$0xff]
        %v141 = vld [vmem:[%s118 + $0x8] sm:$0xff]
        %v142 = vld [vmem:[%s118 + $0x10] sm:$0xff]
        %v143 = vld [vmem:[%s118 + $0x18] sm:$0xff]
        %v144 = vld [vmem:[%s118 + $0x20] sm:$0xff]
        %v145 = vld [vmem:[%s118 + $0x28] sm:$0xff]
        %v146 = vld [vmem:[%s118 + $0x30] sm:$0xff]
        %v147 = vld [vmem:[%s118 + $0x38] sm:$0xff]
        %v148 = vld [vmem:[%s118 + $0x40] sm:$0xff]
        %v149 = vld [vmem:[%s118 + $0x48] sm:$0xff]
        %v150 = vld [vmem:[%s118 + $0x50] sm:$0xff]
        %v151 = vld [vmem:[%s118 + $0x58] sm:$0xff]
        %v152 = vld [vmem:[%s118 + $0x60] sm:$0xff]
        %v153 = vld [vmem:[%s118 + $0x68] sm:$0xff]
        %v154 = vld [vmem:[%s118 + $0x70] sm:$0xff]
        %v155 = vld [vmem:[%s118 + $0x78] sm:$0xff]
        %v156 = vld [vmem:[%s118 + $0x80] sm:$0xff]
        %v157 = vld [vmem:[%s118 + $0x88] sm:$0xff]
        %v158 = vld [vmem:[%s118 + $0x90] sm:$0xff]
        %v159 = vld [vmem:[%s118 + $0x98] sm:$0xff]
        %v160 = vld [vmem:[%s118 + $0xa0] sm:$0xff]
        %v161 = vld [vmem:[%s118 + $0xa8] sm:$0xff]
        %v162 = vld [vmem:[%s118 + $0xb0] sm:$0xff]
        %v163 = vld [vmem:[%s118 + $0xb8] sm:$0xff]
        %v164 = vld [vmem:[%s118 + $0xc0] sm:$0xff]
        %v165 = vld [vmem:[%s118 + $0xc8] sm:$0xff]
        %v166 = vld [vmem:[%s118 + $0xd0] sm:$0xff]
        %v167 = vld [vmem:[%s118 + $0xd8] sm:$0xff]
        %v168 = vld [vmem:[%s118 + $0xe0] sm:$0xff]
        %v169 = vld [vmem:[%s118 + $0xe8] sm:$0xff]
        %v170 = vld [vmem:[%s118 + $0xf0] sm:$0xff]
        %v171 = vld [vmem:[%s118 + $0xf8] sm:$0xff]
        %v172 = vadd.f32 %v140, %v141
        %v173 = vadd.f32 %v172, %v142
        %v174 = vadd.f32 %v173, %v143
        %v175 = vadd.f32 %v174, %v144
        %v176 = vadd.f32 %v175, %v145
        %v177 = vadd.f32 %v176, %v146
        %v178 = vadd.f32 %v177, %v147
        %v179 = vadd.f32 %v178, %v148
        %v180 = vadd.f32 %v179, %v149
        %v181 = vadd.f32 %v180, %v150
        %v182 = vadd.f32 %v181, %v151
        %v183 = vadd.f32 %v182, %v152
        %v184 = vadd.f32 %v183, %v153
        %v185 = vadd.f32 %v184, %v154
        %v186 = vadd.f32 %v185, %v155
        %187 = vadd.xlane.f32.xlu0 %v186
        %v188 = vpop.xlane.xlu0 %187
        %v189 = vadd.f32 %v156, %v157
        %v190 = vadd.f32 %v189, %v158
        %v191 = vadd.f32 %v190, %v159
        %v192 = vadd.f32 %v191, %v160
        %v193 = vadd.f32 %v192, %v161
        %v194 = vadd.f32 %v193, %v162
        %v195 = vadd.f32 %v194, %v163
        %v196 = vadd.f32 %v195, %v164
        %v197 = vadd.f32 %v196, %v165
        %v198 = vadd.f32 %v197, %v166
        %v199 = vadd.f32 %v198, %v167
        %v200 = vadd.f32 %v199, %v168
        %v201 = vadd.f32 %v200, %v169
        %v202 = vadd.f32 %v201, %v170
        %v203 = vadd.f32 %v202, %v171
        %204 = vadd.xlane.f32.xlu0 %v203
        %v205 = vpop.xlane.xlu0 %204
        %v206 = vmul.f32 %v140, %v140
        %v207 = vmul.f32 %v141, %v141
        %v208 = vmul.f32 %v142, %v142
        %v209 = vmul.f32 %v143, %v143
        %v210 = vmul.f32 %v144, %v144
        %v211 = vmul.f32 %v145, %v145
        %v212 = vmul.f32 %v146, %v146
        %v213 = vmul.f32 %v147, %v147
        %v214 = vmul.f32 %v148, %v148
        %v215 = vmul.f32 %v149, %v149
        %v216 = vmul.f32 %v150, %v150
        %v217 = vmul.f32 %v151, %v151
        %v218 = vmul.f32 %v152, %v152
        %v219 = vmul.f32 %v153, %v153
        %v220 = vmul.f32 %v154, %v154
        %v221 = vmul.f32 %v155, %v155
        %v222 = vmul.f32 %v156, %v156
        %v223 = vmul.f32 %v157, %v157
        %v224 = vmul.f32 %v158, %v158
        %v225 = vmul.f32 %v159, %v159
        %v226 = vmul.f32 %v160, %v160
        %v227 = vmul.f32 %v161, %v161
        %v228 = vmul.f32 %v162, %v162
        %v229 = vmul.f32 %v163, %v163
        %v230 = vmul.f32 %v164, %v164
        %v231 = vmul.f32 %v165, %v165
        %v232 = vmul.f32 %v166, %v166
        %v233 = vmul.f32 %v167, %v167
        %v234 = vmul.f32 %v168, %v168
        %v235 = vmul.f32 %v169, %v169
        %v236 = vmul.f32 %v170, %v170
        %v237 = vmul.f32 %v171, %v171
        %v238 = vadd.f32 %v206, %v207
        %v239 = vadd.f32 %v238, %v208
        %v240 = vadd.f32 %v239, %v209
        %v241 = vadd.f32 %v240, %v210
        %v242 = vadd.f32 %v241, %v211
        %v243 = vadd.f32 %v242, %v212
        %v244 = vadd.f32 %v243, %v213
        %v245 = vadd.f32 %v244, %v214
        %v246 = vadd.f32 %v245, %v215
        %v247 = vadd.f32 %v246, %v216
        %v248 = vadd.f32 %v247, %v217
        %v249 = vadd.f32 %v248, %v218
        %v250 = vadd.f32 %v249, %v219
        %v251 = vadd.f32 %v250, %v220
        %v252 = vadd.f32 %v251, %v221
        %253 = vadd.xlane.f32.xlu0 %v252
        %v254 = vpop.xlane.xlu0 %253
        %v255 = vadd.f32 %v222, %v223
        %v256 = vadd.f32 %v255, %v224
        %v257 = vadd.f32 %v256, %v225
        %v258 = vadd.f32 %v257, %v226
        %v259 = vadd.f32 %v258, %v227
        %v260 = vadd.f32 %v259, %v228
        %v261 = vadd.f32 %v260, %v229
        %v262 = vadd.f32 %v261, %v230
        %v263 = vadd.f32 %v262, %v231
        %v264 = vadd.f32 %v263, %v232
        %v265 = vadd.f32 %v264, %v233
        %v266 = vadd.f32 %v265, %v234
        %v267 = vadd.f32 %v266, %v235
        %v268 = vadd.f32 %v267, %v236
        %v269 = vadd.f32 %v268, %v237
        %270 = vadd.xlane.f32.xlu0 %v269
        %v271 = vpop.xlane.xlu0 %270
        %v272 = vmul.f32 %v188, 0.00048828125
        %v273 = vmul.f32 %v205, 0.00048828125
        %v274 = vmul.f32 %v188, %v272
        %v275 = vmul.f32 %v205, %v273
        %v276 = vsub.f32 %v254, %v274
        %v277 = vsub.f32 %v271, %v275
        %v278 = vmul.f32 %v276, 0.0004885198
        %v279 = vmul.f32 %v277, 0.0004885198
        %v280 = vmax.f32 %v278, 0.0
        %v281 = vmax.f32 %v279, 0.0
        %v282 = vrsqrt.pop %v280
        %v283 = vmul.f32 %v282, %v280
        %v284 = vmul.f32 %v283, %v282
        %v285 = vmul.f32 0.5, %v284
        %v286 = vsub.f32 1.5, %v285
        %v287 = vmul.f32 %v282, %v286
        %v288 = vmul.f32 %v280, %v287
        %vm289 = vcmp.eq.f32.partialorder %v280, inf
        %v290 = vsel %vm289, %v280, %v288
        %vm291 = vcmp.eq.f32.partialorder %v280, 0.0
        %v292 = vand.u32 %v280, 2147483648
        %v293 = vsel %vm291, %v292, %v290
        %v294 = vrsqrt.pop %v281
        %v295 = vmul.f32 %v294, %v281
        %v296 = vmul.f32 %v295, %v294
        %v297 = vmul.f32 0.5, %v296
        %v298 = vsub.f32 1.5, %v297
        %v299 = vmul.f32 %v294, %v298
        %v300 = vmul.f32 %v281, %v299
        %vm301 = vcmp.eq.f32.partialorder %v281, inf
        %v302 = vsel %vm301, %v281, %v300
        %vm303 = vcmp.eq.f32.partialorder %v281, 0.0
        %v304 = vand.u32 %v281, 2147483648
        %v305 = vsel %vm303, %v304, %v302
        %v306 = vadd.f32 %v293, 1e-10
        %v307 = vadd.f32 %v305, 1e-10
        %v308 = vrcp.pop %v306
        %v309 = vmul.f32 %v306, %v308
        %v310 = vsub.f32 1.0, %v309
        %v311 = vmul.f32 %v308, %v310
        %v312 = vadd.f32 %v308, %v311
        %vm313 = vweird.f32 %v306
        %vm314 = vweird.f32 %v308
        %vm315 = vmor %vm313, %vm314
        %v316 = vsel %vm315, %v308, %v312
        %v317 = vand.u32 2147483647, %v306
        %vm318 = vcmp.eq.f32.partialorder %v317, 8.507059e+37
        %v319 = vand.u32 %v306, 2147483648
        %v320 = vor.u32 1.1754944e-38, %v319
        %v321 = vsel %vm318, %v320, %v316
        %v322 = vrcp.pop %v307
        %v323 = vmul.f32 %v307, %v322
        %v324 = vsub.f32 1.0, %v323
        %v325 = vmul.f32 %v322, %v324
        %v326 = vadd.f32 %v322, %v325
        %vm327 = vweird.f32 %v307
        %vm328 = vweird.f32 %v322
        %vm329 = vmor %vm327, %vm328
        %v330 = vsel %vm329, %v322, %v326
        %v331 = vand.u32 2147483647, %v307
        %vm332 = vcmp.eq.f32.partialorder %v331, 8.507059e+37
        %v333 = vand.u32 %v307, 2147483648
        %v334 = vor.u32 1.1754944e-38, %v333
        %v335 = vsel %vm332, %v334, %v330
        %v336 = vsub.f32 %v140, %v272
        %v337 = vsub.f32 %v141, %v272
        %v338 = vsub.f32 %v142, %v272
        %v339 = vsub.f32 %v143, %v272
        %v340 = vsub.f32 %v144, %v272
        %v341 = vsub.f32 %v145, %v272
        %v342 = vsub.f32 %v146, %v272
        %v343 = vsub.f32 %v147, %v272
        %v344 = vsub.f32 %v148, %v272
        %v345 = vsub.f32 %v149, %v272
        %v346 = vsub.f32 %v150, %v272
        %v347 = vsub.f32 %v151, %v272
        %v348 = vsub.f32 %v152, %v272
        %v349 = vsub.f32 %v153, %v272
        %v350 = vsub.f32 %v154, %v272
        %v351 = vsub.f32 %v155, %v272
        %v352 = vsub.f32 %v156, %v273
        %v353 = vsub.f32 %v157, %v273
        %v354 = vsub.f32 %v158, %v273
        %v355 = vsub.f32 %v159, %v273
        %v356 = vsub.f32 %v160, %v273
        %v357 = vsub.f32 %v161, %v273
        %v358 = vsub.f32 %v162, %v273
        %v359 = vsub.f32 %v163, %v273
        %v360 = vsub.f32 %v164, %v273
        %v361 = vsub.f32 %v165, %v273
        %v362 = vsub.f32 %v166, %v273
        %v363 = vsub.f32 %v167, %v273
        %v364 = vsub.f32 %v168, %v273
        %v365 = vsub.f32 %v169, %v273
        %v366 = vsub.f32 %v170, %v273
        %v367 = vsub.f32 %v171, %v273
        %v368 = vmul.f32 %v336, %v321
        %v369 = vmul.f32 %v337, %v321
        %v370 = vmul.f32 %v338, %v321
        %v371 = vmul.f32 %v339, %v321
        %v372 = vmul.f32 %v340, %v321
        %v373 = vmul.f32 %v341, %v321
        %v374 = vmul.f32 %v342, %v321
        %v375 = vmul.f32 %v343, %v321
        %v376 = vmul.f32 %v344, %v321
        %v377 = vmul.f32 %v345, %v321
        %v378 = vmul.f32 %v346, %v321
        %v379 = vmul.f32 %v347, %v321
        %v380 = vmul.f32 %v348, %v321
        %v381 = vmul.f32 %v349, %v321
        %v382 = vmul.f32 %v350, %v321
        %v383 = vmul.f32 %v351, %v321
        %v384 = vmul.f32 %v352, %v335
        %v385 = vmul.f32 %v353, %v335
        %v386 = vmul.f32 %v354, %v335
        %v387 = vmul.f32 %v355, %v335
        %v388 = vmul.f32 %v356, %v335
        %v389 = vmul.f32 %v357, %v335
        %v390 = vmul.f32 %v358, %v335
        %v391 = vmul.f32 %v359, %v335
        %v392 = vmul.f32 %v360, %v335
        %v393 = vmul.f32 %v361, %v335
        %v394 = vmul.f32 %v362, %v335
        %v395 = vmul.f32 %v363, %v335
        %v396 = vmul.f32 %v364, %v335
        %v397 = vmul.f32 %v365, %v335
        %v398 = vmul.f32 %v366, %v335
        %v399 = vmul.f32 %v367, %v335
        %400 = vst [vmem:[%s137] sm:$0xff] %v368
        %401 = vst [vmem:[%s137 + $0x8] sm:$0xff] %v369
        %402 = vst [vmem:[%s137 + $0x10] sm:$0xff] %v370
        %403 = vst [vmem:[%s137 + $0x18] sm:$0xff] %v371
        %404 = vst [vmem:[%s137 + $0x20] sm:$0xff] %v372
        %405 = vst [vmem:[%s137 + $0x28] sm:$0xff] %v373
        %406 = vst [vmem:[%s137 + $0x30] sm:$0xff] %v374
        %407 = vst [vmem:[%s137 + $0x38] sm:$0xff] %v375
        %408 = vst [vmem:[%s137 + $0x40] sm:$0xff] %v376
        %409 = vst [vmem:[%s137 + $0x48] sm:$0xff] %v377
        %410 = vst [vmem:[%s137 + $0x50] sm:$0xff] %v378
        %411 = vst [vmem:[%s137 + $0x58] sm:$0xff] %v379
        %412 = vst [vmem:[%s137 + $0x60] sm:$0xff] %v380
        %413 = vst [vmem:[%s137 + $0x68] sm:$0xff] %v381
        %414 = vst [vmem:[%s137 + $0x70] sm:$0xff] %v382
        %415 = vst [vmem:[%s137 + $0x78] sm:$0xff] %v383
        %416 = vst [vmem:[%s137 + $0x80] sm:$0xff] %v384
        %417 = vst [vmem:[%s137 + $0x88] sm:$0xff] %v385
        %418 = vst [vmem:[%s137 + $0x90] sm:$0xff] %v386
        %419 = vst [vmem:[%s137 + $0x98] sm:$0xff] %v387
        %420 = vst [vmem:[%s137 + $0xa0] sm:$0xff] %v388
        %421 = vst [vmem:[%s137 + $0xa8] sm:$0xff] %v389
        %422 = vst [vmem:[%s137 + $0xb0] sm:$0xff] %v390
        %423 = vst [vmem:[%s137 + $0xb8] sm:$0xff] %v391
        %424 = vst [vmem:[%s137 + $0xc0] sm:$0xff] %v392
        %425 = vst [vmem:[%s137 + $0xc8] sm:$0xff] %v393
        %426 = vst [vmem:[%s137 + $0xd0] sm:$0xff] %v394
        %427 = vst [vmem:[%s137 + $0xd8] sm:$0xff] %v395
        %428 = vst [vmem:[%s137 + $0xe0] sm:$0xff] %v396
        %429 = vst [vmem:[%s137 + $0xe8] sm:$0xff] %v397
        %430 = vst [vmem:[%s137 + $0xf0] sm:$0xff] %v398
        %431 = vst [vmem:[%s137 + $0xf8] sm:$0xff] %v399
        %s432 = sand.u32 %s52, 1
        %s433 = scalar_lea.sflag [#allocation4], %s432
        %s434 = sand.u32 %s52, 1
        %s435 = smul.addr %s434, 256
        %s436 = scalar_lea.vmem [#allocation5], %s435
        // Predicated region
        $region29: #{tpu_custom_call.1} parent=23 // pred_check
          %p437 = pneg %p62
        $region30: #{tpu_custom_call.1} parent=23 // pred_check_branch
          %439 = sbr.rel (%p437) target = $region32
        $region31: #{tpu_custom_call.1} parent=23 // pred_region
          %s440 = smul.u32 2, %s18
          %442 = vsyncadd %s433, 0
          %s443 = smul.addr %s440, 16
          %s444 = smul.addr %s443, 8
          %s445 = scalar_lea.hbm %s1, %s444
          %s446 = sshll.u32 %s436, 4
          %s447 = int_to_ptr.vmem [resolvable:$true] %s446
          %s448 = sshll.u32 %s445, 4
          %s449 = int_to_ptr.hbm [resolvable:$true] %s448
          %454 = dma.vmem_to_hbm [thread:$0]  %s447, 4096, %s449, %s433, 2048, 2048, 128
        $region32: #{tpu_custom_call.1} parent=23 // pred_fallthru
          _
      $region24: #{tpu_custom_call.1} parent=5 // pred_fallthru
        _
      %p455 = scmp.le.s32.totalorder 2, %s13
      // Predicated region
      $region33: #{tpu_custom_call.1} parent=5 // pred_check
        %p456 = pneg %p455
      $region34: #{tpu_custom_call.1} parent=5 // pred_check_branch
        %458 = sbr.rel (%p456) target = $region36
      $region35: #{tpu_custom_call.1} parent=5 // pred_region
        %s459 = ssub.s32 %s13, 2
        // Predicated region
        $region37: #{tpu_custom_call.1} parent=35 // pred_check
          %p460 = pneg %p68
        $region38: #{tpu_custom_call.1} parent=35 // pred_check_branch
          %462 = sbr.rel (%p460) target = $region40
        $region39: #{tpu_custom_call.1} parent=35 // pred_region
          %s463 = sand.u32 %s53, 1
          %s464 = scalar_lea.sflag [#allocation4], %s463
          %s465 = sand.u32 %s53, 1
          %s466 = smul.addr %s465, 256
          %s467 = scalar_lea.vmem [#allocation5], %s466
          %469 = dma.done %s464, 4096
        $region40: #{tpu_custom_call.1} parent=35 // pred_fallthru
          _
      $region36: #{tpu_custom_call.1} parent=5 // pred_fallthru
        _
    $region6: #{tpu_custom_call.1} parent=1 // loop_footer
      %s17 = sadd.s32 1, %s13
    $region7: #{tpu_custom_call.1} parent=1 // loop_footer_branch
      %12 = sbr.rel target = $region3
    $region8: #{tpu_custom_call.1} parent=1 // loop_exit
      _
    %470 = vsyncpa [#allocation3], 1
    %s471 = scalar_lea.sflag [#allocation3], 1
    %472 = vsyncpa %s471, 1
    %473 = vsyncpa [#allocation4], 1
    %s474 = scalar_lea.sflag [#allocation4], 1
    %475 = vsyncpa %s474, 1

</llo_original>
